<compile_context>
chip_gen: v6e
topology: v6e:2x2x1
jax: 0.10.0
libtpu: 0.0.40
codegen_flags: <defaults>
</compile_context>

<pallas_src>
import jax
import jax.numpy as jnp
from jax.experimental import pallas as pl
from jax.experimental.pallas import tpu as pltpu

INPUT_SIZE = 13
HIDDEN_SIZE = 100
OUTPUT_SIZE = 3

F_PAD = 16    # padded input-feature dim (13 -> 16, two sublane rows of w1)
H_PAD = 128   # padded hidden dim
O_PAD = 128   # padded output dim

_NEG_BIG = -1e30  # baked into b3's pad lanes; acts as -inf for the softmax


def _mlp_kernel(x_ref, w1_ref, b1_ref, w2_ref, b2_ref, w3_ref, b3_ref, out_ref):
    wdt = w1_ref.dtype                       # f32 or bf16 weights
    x = x_ref[...].astype(wdt)               # (TB, 16)

    # fc1 + sigmoid. Pad lanes of h1 become sigmoid(0)=0.5, but the matching
    # rows of w2 are zero, so they never leak into valid lanes.
    h1 = jnp.dot(x, w1_ref[...], preferred_element_type=jnp.float32)
    h1 = jax.nn.sigmoid(h1 + b1_ref[...])    # (TB, 128) f32

    # fc2 + sigmoid
    h2 = jnp.dot(h1.astype(wdt), w2_ref[...], preferred_element_type=jnp.float32)
    h2 = jax.nn.sigmoid(h2 + b2_ref[...])    # (TB, 128) f32

    # fc3 (no activation). b3's pad lanes hold -1e30, so padded logits are
    # already effectively -inf -> no explicit mask needed before log_softmax.
    logits = jnp.dot(h2.astype(wdt), w3_ref[...], preferred_element_type=jnp.float32)
    logits = logits + b3_ref[...]            # (TB, 128) f32

    # Numerically stable log_softmax on the full 128-lane tile; pad lanes
    # contribute exp(~-1e30) == 0 to the normalizer.
    m = jnp.max(logits, axis=-1, keepdims=True)
    z = logits - m
    lse = jnp.log(jnp.sum(jnp.exp(z), axis=-1, keepdims=True))
    # Lane-dense unmasked store; pad lanes are sliced away by the wrapper.
    out_ref[...] = z - lse


def _choose_tile_b(batch):
    """>=256-row tiles for big batches; 2 tiles (>=8 rows each) otherwise so
    v7x's two TensorCores both get work. Always a multiple of 8."""
    if batch >= 512:
        return 256
    half = (batch + 1) // 2
    return max(8, ((half + 7) // 8) * 8)


def net_forward(x, params, *, tile_b=None):
    """x: (B, 13) float32. params: lane-padded weights from init_params."""
    w1, b1, w2, b2, w3, b3 = params
    B = x.shape[0]
    if tile_b is None:
        tile_b = _choose_tile_b(B)
    b_pad = pl.cdiv(B, tile_b) * tile_b

    # Zero-pad batch rows to a tile multiple and features 13 -> 16 so the
    # kernel only touches aligned tiles; only ~1.2x input inflation now.
    x_p = jnp.zeros((b_pad, F_PAD), jnp.float32).at[:B, :INPUT_SIZE].set(x)

    # Weights/biases use full, constant-index blocks: they stay resident in
    # VMEM across the whole grid (not re-DMA'd per batch tile).
    full = lambda a: pl.BlockSpec(a.shape, lambda i: (0,) * a.ndim)

    out = pl.pallas_call(
        _mlp_kernel,
        out_shape=jax.ShapeDtypeStruct((b_pad, O_PAD), jnp.float32),
        grid=(b_pad // tile_b,),
        in_specs=[
            pl.BlockSpec((tile_b, F_PAD), lambda i: (i, 0)),   # x batch tile
            full(w1), full(b1), full(w2), full(b2), full(w3), full(b3),
        ],
        out_specs=pl.BlockSpec((tile_b, O_PAD), lambda i: (i, 0)),
        compiler_params=pltpu.CompilerParams(
            dimension_semantics=("parallel",)),
    )(x_p, w1, b1, w2, b2, w3, b3)

    return out[:B, :OUTPUT_SIZE]


def init_params(key, weights_dtype=jnp.float32):
    """Deterministic PyTorch-style uniform init, stored as (in, out), padded
    to kernel shapes. Weights may be bf16 (v6e/v7x); biases stay f32 so the
    bias-add/sigmoid/log_softmax path runs in f32 everywhere (v5e-safe).
    b3's padded lanes are pre-filled with -1e30 (softmax mask baked in)."""
    ks = jax.random.split(key, 6)

    def linear(kw, kb, fan_in, fan_out, pad_in, pad_out, bias_pad_value=0.0):
        bound = 1.0 / (fan_in ** 0.5)
        w = jax.random.uniform(kw, (fan_in, fan_out), jnp.float32, -bound, bound)
        b = jax.random.uniform(kb, (1, fan_out), jnp.float32, -bound, bound)
        w_p = jnp.zeros((pad_in, pad_out), jnp.float32).at[:fan_in, :fan_out].set(w)
        b_p = jnp.full((1, pad_out), bias_pad_value, jnp.float32).at[:, :fan_out].set(b)
        return w_p.astype(weights_dtype), b_p

    w1, b1 = linear(ks[0], ks[1], INPUT_SIZE, HIDDEN_SIZE, F_PAD, H_PAD)
    w2, b2 = linear(ks[2], ks[3], HIDDEN_SIZE, HIDDEN_SIZE, H_PAD, H_PAD)
    w3, b3 = linear(ks[4], ks[5], HIDDEN_SIZE, OUTPUT_SIZE, H_PAD, O_PAD,
                    bias_pad_value=_NEG_BIG)
    return (w1, b1, w2, b2, w3, b3)


def reference_forward(x, params):
    """Pure-JAX f32 reference on the unpadded (logical) weights."""
    w1, b1, w2, b2, w3, b3 = params
    w1 = w1[:INPUT_SIZE, :HIDDEN_SIZE].astype(jnp.float32)
    w2 = w2[:HIDDEN_SIZE, :HIDDEN_SIZE].astype(jnp.float32)
    w3 = w3[:HIDDEN_SIZE, :OUTPUT_SIZE].astype(jnp.float32)
    b1 = b1[:, :HIDDEN_SIZE]
    b2 = b2[:, :HIDDEN_SIZE]
    b3 = b3[:, :OUTPUT_SIZE]
    h1 = jax.nn.sigmoid(x @ w1 + b1)
    h2 = jax.nn.sigmoid(h1 @ w2 + b2)
    logits = h2 @ w3 + b3
    return jax.nn.log_softmax(logits, axis=-1)


if __name__ == "__main__":
    key = jax.random.PRNGKey(0)
    k_x, k_p = jax.random.split(key)

    B = 64
    x = jax.random.normal(k_x, (B, INPUT_SIZE), dtype=jnp.float32)

    # f32 weights: tight match against the pure-JAX reference.
    params_f32 = init_params(k_p, weights_dtype=jnp.float32)
    out = jax.block_until_ready(net_forward(x, params_f32))
    ref = reference_forward(x, params_f32)
    assert out.shape == (B, OUTPUT_SIZE)
    assert jnp.allclose(out, ref, atol=1e-5, rtol=1e-5), "f32 mismatch vs reference"

    # bf16 weights (halves weight DMA, single-pass MXU on v6e/v7x); looser
    # tolerance since activations are quantized to bf16 before each dot.
    params_bf16 = init_params(k_p, weights_dtype=jnp.bfloat16)
    out_bf16 = jax.block_until_ready(net_forward(x, params_bf16))
    ref_bf16 = reference_forward(x, params_bf16)
    assert jnp.allclose(out_bf16, ref_bf16, atol=2e-2, rtol=2e-2), \
        "bf16 mismatch vs reference"

    print("KERNEL_OK")
</pallas_src>

<mosaic_0001>
module attributes {stable_mosaic.version = 11 : i64} {
  func.func @_mlp_kernel(%arg0: i32, %arg1: memref<32x16xf32, #tpu.memory_space<vmem>>, %arg2: memref<16x128xf32, #tpu.memory_space<vmem>>, %arg3: memref<1x128xf32, #tpu.memory_space<vmem>>, %arg4: memref<128x128xf32, #tpu.memory_space<vmem>>, %arg5: memref<1x128xf32, #tpu.memory_space<vmem>>, %arg6: memref<128x128xf32, #tpu.memory_space<vmem>>, %arg7: memref<1x128xf32, #tpu.memory_space<vmem>>, %arg8: memref<32x128xf32, #tpu.memory_space<vmem>>) attributes {dimension_semantics = [#tpu.dimension_semantics<parallel>], iteration_bounds = array<i64: 2>, scalar_prefetch = 0 : i64, scratch_operands = 0 : i64, tpu.core_type = #tpu.core_type<tc>, window_params = [{transform_indices = @transform_0, window_bounds = array<i64: 32, 16>}, {pipeline_mode = #tpu.pipeline_mode<synchronous>, transform_indices = @transform_1, window_bounds = array<i64: 16, 128>}, {pipeline_mode = #tpu.pipeline_mode<synchronous>, transform_indices = @transform_2, window_bounds = array<i64: 1, 128>}, {pipeline_mode = #tpu.pipeline_mode<synchronous>, transform_indices = @transform_3, window_bounds = array<i64: 128, 128>}, {pipeline_mode = #tpu.pipeline_mode<synchronous>, transform_indices = @transform_4, window_bounds = array<i64: 1, 128>}, {pipeline_mode = #tpu.pipeline_mode<synchronous>, transform_indices = @transform_5, window_bounds = array<i64: 128, 128>}, {pipeline_mode = #tpu.pipeline_mode<synchronous>, transform_indices = @transform_6, window_bounds = array<i64: 1, 128>}, {transform_indices = @transform_7, window_bounds = array<i64: 32, 128>}]} {
    %c0 = arith.constant 0 : index
    %c0_0 = arith.constant 0 : index
    %0 = vector.load %arg1[%c0, %c0_0] : memref<32x16xf32, #tpu.memory_space<vmem>>, vector<32x16xf32>
    %c0_1 = arith.constant 0 : index
    %c0_2 = arith.constant 0 : index
    %1 = vector.load %arg2[%c0_1, %c0_2] : memref<16x128xf32, #tpu.memory_space<vmem>>, vector<16x128xf32>
    %cst = arith.constant dense<0.000000e+00> : vector<32x128xf32>
    %2 = tpu.matmul %0, %1, %cst {dimension_numbers = #tpu.dot_dimension_numbers<[1], [0], [0], [1], [0, 0, 1, 1], [], []>} : vector<32x16xf32>, vector<16x128xf32>, vector<32x128xf32> -> vector<32x128xf32>
    %c0_3 = arith.constant 0 : index
    %c0_4 = arith.constant 0 : index
    %3 = vector.load %arg3[%c0_3, %c0_4] : memref<1x128xf32, #tpu.memory_space<vmem>>, vector<1x128xf32>
    %4 = vector.broadcast %3 : vector<1x128xf32> to vector<32x128xf32>
    %5 = arith.addf %2, %4 : vector<32x128xf32>
    %6 = arith.negf %5 : vector<32x128xf32>
    %7 = math.exp %6 : vector<32x128xf32>
    %cst_5 = arith.constant 1.000000e+00 : f32
    %8 = vector.broadcast %cst_5 : f32 to vector<32x128xf32>
    %9 = arith.addf %8, %7 : vector<32x128xf32>
    %10 = arith.divf %8, %9 : vector<32x128xf32>
    %c0_6 = arith.constant 0 : index
    %c0_7 = arith.constant 0 : index
    %11 = vector.load %arg4[%c0_6, %c0_7] : memref<128x128xf32, #tpu.memory_space<vmem>>, vector<128x128xf32>
    %cst_8 = arith.constant dense<0.000000e+00> : vector<32x128xf32>
    %12 = tpu.matmul %10, %11, %cst_8 {dimension_numbers = #tpu.dot_dimension_numbers<[1], [0], [0], [1], [0, 0, 1, 1], [], []>} : vector<32x128xf32>, vector<128x128xf32>, vector<32x128xf32> -> vector<32x128xf32>
    %c0_9 = arith.constant 0 : index
    %c0_10 = arith.constant 0 : index
    %13 = vector.load %arg5[%c0_9, %c0_10] : memref<1x128xf32, #tpu.memory_space<vmem>>, vector<1x128xf32>
    %14 = vector.broadcast %13 : vector<1x128xf32> to vector<32x128xf32>
    %15 = arith.addf %12, %14 : vector<32x128xf32>
    %16 = arith.negf %15 : vector<32x128xf32>
    %17 = math.exp %16 : vector<32x128xf32>
    %cst_11 = arith.constant 1.000000e+00 : f32
    %18 = vector.broadcast %cst_11 : f32 to vector<32x128xf32>
    %19 = arith.addf %18, %17 : vector<32x128xf32>
    %20 = arith.divf %18, %19 : vector<32x128xf32>
    %c0_12 = arith.constant 0 : index
    %c0_13 = arith.constant 0 : index
    %21 = vector.load %arg6[%c0_12, %c0_13] : memref<128x128xf32, #tpu.memory_space<vmem>>, vector<128x128xf32>
    %cst_14 = arith.constant dense<0.000000e+00> : vector<32x128xf32>
    %22 = tpu.matmul %20, %21, %cst_14 {dimension_numbers = #tpu.dot_dimension_numbers<[1], [0], [0], [1], [0, 0, 1, 1], [], []>} : vector<32x128xf32>, vector<128x128xf32>, vector<32x128xf32> -> vector<32x128xf32>
    %c0_15 = arith.constant 0 : index
    %c0_16 = arith.constant 0 : index
    %23 = vector.load %arg7[%c0_15, %c0_16] : memref<1x128xf32, #tpu.memory_space<vmem>>, vector<1x128xf32>
    %24 = vector.broadcast %23 : vector<1x128xf32> to vector<32x128xf32>
    %25 = arith.addf %22, %24 : vector<32x128xf32>
    %cst_17 = arith.constant dense<0xFF800000> : vector<32xf32>
    %26 = vector.multi_reduction <maximumf>, %25, %cst_17 [1] : vector<32x128xf32> to vector<32xf32>
    %27 = vector.shape_cast %26 : vector<32xf32> to vector<32x1xf32>
    %28 = vector.broadcast %27 : vector<32x1xf32> to vector<32x128xf32>
    %29 = arith.subf %25, %28 : vector<32x128xf32>
    %30 = math.exp %29 : vector<32x128xf32>
    %cst_18 = arith.constant dense<0.000000e+00> : vector<32xf32>
    %31 = vector.multi_reduction <add>, %30, %cst_18 [1] : vector<32x128xf32> to vector<32xf32>
    %32 = vector.shape_cast %31 : vector<32xf32> to vector<32x1xf32>
    %33 = math.log %32 : vector<32x1xf32>
    %34 = vector.broadcast %33 : vector<32x1xf32> to vector<32x128xf32>
    %35 = arith.subf %29, %34 : vector<32x128xf32>
    %c0_19 = arith.constant 0 : index
    %c0_20 = arith.constant 0 : index
    %36 = vector.load %arg8[%c0_19, %c0_20] : memref<32x128xf32, #tpu.memory_space<vmem>>, vector<32x128xf32>
    tpu.vector_store %arg8[%c0_19, %c0_20], %35 {strides = array<i32>} : memref<32x128xf32, #tpu.memory_space<vmem>>, vector<32x128xf32>,
    return
  }
  func.func @transform_0(%arg0: i32) -> (i32, i32) {
    %c0_i32 = arith.constant 0 : i32
    %c0_i32_0 = arith.constant 0 : i32
    return %arg0, %c0_i32 : i32, i32
  }
  func.func @transform_1(%arg0: i32) -> (i32, i32) {
    %c0_i32 = arith.constant 0 : i32
    %c0_i32_0 = arith.constant 0 : i32
    %c0_i32_1 = arith.constant 0 : i32
    return %c0_i32, %c0_i32_0 : i32, i32
  }
  func.func @transform_2(%arg0: i32) -> (i32, i32) {
    %c0_i32 = arith.constant 0 : i32
    %c0_i32_0 = arith.constant 0 : i32
    %c0_i32_1 = arith.constant 0 : i32
    return %c0_i32, %c0_i32_0 : i32, i32
  }
  func.func @transform_3(%arg0: i32) -> (i32, i32) {
    %c0_i32 = arith.constant 0 : i32
    %c0_i32_0 = arith.constant 0 : i32
    %c0_i32_1 = arith.constant 0 : i32
    return %c0_i32, %c0_i32_0 : i32, i32
  }
  func.func @transform_4(%arg0: i32) -> (i32, i32) {
    %c0_i32 = arith.constant 0 : i32
    %c0_i32_0 = arith.constant 0 : i32
    %c0_i32_1 = arith.constant 0 : i32
    return %c0_i32, %c0_i32_0 : i32, i32
  }
  func.func @transform_5(%arg0: i32) -> (i32, i32) {
    %c0_i32 = arith.constant 0 : i32
    %c0_i32_0 = arith.constant 0 : i32
    %c0_i32_1 = arith.constant 0 : i32
    return %c0_i32, %c0_i32_0 : i32, i32
  }
  func.func @transform_6(%arg0: i32) -> (i32, i32) {
    %c0_i32 = arith.constant 0 : i32
    %c0_i32_0 = arith.constant 0 : i32
    %c0_i32_1 = arith.constant 0 : i32
    return %c0_i32, %c0_i32_0 : i32, i32
  }
  func.func @transform_7(%arg0: i32) -> (i32, i32) {
    %c0_i32 = arith.constant 0 : i32
    %c0_i32_0 = arith.constant 0 : i32
    return %arg0, %c0_i32 : i32, i32
  }
}

</mosaic_0001>

<llo_original>
// kernel: tpu_custom_call.1
$region0: #{tpu_custom_call.1}
  #allocation0 [shape = 'u32[]', space=smem, size = 0x4, offset = 0x4, fixed_abs, tag = 'smem constant byte address 0x4 - core index']
  #allocation1 [shape = 'u32[144,128]{1,0:T(1,128)}', space=vmem, size = 0x12000, scoped, tag = 'internal scratch']
  %s0 = inlined_call_operand.vmem [shape: f32[64,16], index: 0, kind: input, shape index: {}]
  %s1 = inlined_call_operand.vmem [shape: f32[16,128], index: 1, kind: input, shape index: {}]
  %s2 = inlined_call_operand.vmem [shape: f32[1,128], index: 2, kind: input, shape index: {}]
  %s3 = inlined_call_operand.hbm [shape: f32[128,128], index: 3, kind: input, shape index: {}]
  %s4 = inlined_call_operand.vmem [shape: f32[1,128], index: 4, kind: input, shape index: {}]
  %s5 = inlined_call_operand.hbm [shape: f32[128,128], index: 5, kind: input, shape index: {}]
  %s6 = inlined_call_operand.vmem [shape: f32[1,128], index: 6, kind: input, shape index: {}]
  %s7 = inlined_call_operand.hbm [shape: f32[64,128], index: 7, kind: output, shape index: {}]
  %s8 = sld [smem:[#allocation0]]
  $region69: #{tpu_custom_call.1} parent=0
    _
  %s10 = ssub.s32 1, %s8
  %s11 = scalar_select 0, %s10, %s8
  $region1: #{tpu_custom_call.1} parent=0
    #allocation2 [shape = 'u8[65536]{0}', space=vmem, size = 0x10000, scoped, tag = 'input window, operand 3, single buffered']
    #allocation3 [shape = 's32[2]{0}', space=sflag, size = 0x8, scoped, tag = 'scoped memory for tpu_custom_call.1']
    #allocation4 [shape = 's32[2]{0}', space=sflag, size = 0x8, scoped, tag = 'scoped memory for tpu_custom_call.1']
    #allocation5 [shape = 'u8[65536]{0}', space=vmem, size = 0x10000, scoped, tag = 'input window, operand 5, single buffered']
    #allocation6 [shape = 's32[1]{0}', space=sflag, size = 0x4, scoped, tag = 'scoped memory for tpu_custom_call.1']
    #allocation7 [shape = 'u8[32768]{0}', space=vmem, size = 0x8000, scoped, tag = 'output window, operand 0']
    %12 = vsyncpa [#allocation3], 0
    %13 = vsyncpa [#allocation6], 0
    %14 = vsyncpa [#allocation4], 0
    %s15 = scalar_lea.sflag [#allocation4], 1
    %16 = vsyncpa %s15, 0
    loop: start=0, step=1, limit=4
    $region2: #{tpu_custom_call.1} parent=1 // loop_pre_header
      _
    $region3: #{tpu_custom_call.1} parent=1 // loop_header
      %s18 = sphi 0, %s22
      %p19 = scmp.ge.s32.totalorder %s18, 4
      %s28 = sphi 0, %s30
      %s31 = sphi 0, %s28
      %s32 = sphi 0, %s31
      %s48 = sphi 0, %s32
      %s52 = sphi 0, %s52
      %s54 = sphi 0, %s52
      %s55 = sphi 0, %s54
      %s69 = sphi 0, %s55
      %s73 = sphi 0, %s73
      %s75 = sphi 0, %s73
      %s76 = sphi 0, %s75
      %s90 = sphi 0, %s76
      %s94 = sphi 0, %s94
      %s96 = sphi 0, %s94
      %s97 = sphi 0, %s96
      %s111 = sphi 0, %s97
      %s115 = sphi 0, %s115
      %s117 = sphi 0, %s115
      %s118 = sphi 0, %s117
      %s132 = sphi 0, %s118
      %s136 = sphi 0, %s136
      %s138 = sphi 0, %s136
      %s139 = sphi 0, %s138
      %s153 = sphi 0, %s139
      %s157 = sphi 0, %s157
      %s159 = sphi 0, %s157
      %s160 = sphi 0, %s159
      %s174 = sphi 0, %s160
      %s180 = sphi 0, %s182
      %s183 = sphi 0, %s180
      %s184 = sphi 0, %s183
      %s200 = sphi 0, %s184
    $region4: #{tpu_custom_call.1} parent=1 // loop_header_branch
      %21 = sbr.rel (%p19) target = $region8
    $region5: #{tpu_custom_call.1} parent=1 // loop_body
      %s23 = ssub.s32 %s18, 1
      %s24 = ssub.s32 %s18, 2
      %s25 = sadd.s32 %s18, 1
      %s26 = ssub.s32 %s18, %s25
      %p27 = scmp.eq.s32.totalorder %s26, 0
      %s29 = sadd.s32 %s28, 1
      %s30 = scalar_select %p27, %s28, %s29
      %p33 = pneg %p27
      %p34 = scmp.eq.s32.totalorder %s18, 1
      %p35 = por %p33, %p34
      %p36 = scmp.ne.s32.totalorder %s28, %s31
      %p37 = scmp.eq.s32.totalorder %s18, 0
      %p38 = por %p36, %p37
      %p39 = scmp.ne.s32.totalorder %s28, %s31
      %p40 = scmp.eq.s32.totalorder %s23, 1
      %p41 = por %p39, %p40
      %p42 = scmp.ne.s32.totalorder %s31, %s32
      %p43 = scmp.eq.s32.totalorder %s23, 0
      %p44 = por %p42, %p43
      %p45 = scmp.ne.s32.totalorder %s31, %s32
      %p46 = scmp.eq.s32.totalorder %s24, 1
      %p47 = por %p45, %p46
      %p49 = scmp.ne.s32.totalorder %s32, %s48
      %p50 = scmp.eq.s32.totalorder %s24, 0
      %p51 = por %p49, %p50
      %s53 = sadd.s32 %s52, 1
      %p56 = scmp.eq.s32.totalorder %s18, 1
      %p57 = scmp.ne.s32.totalorder %s52, %s54
      %p58 = scmp.eq.s32.totalorder %s18, 0
      %p59 = por %p57, %p58
      %p60 = scmp.ne.s32.totalorder %s52, %s54
      %p61 = scmp.eq.s32.totalorder %s23, 1
      %p62 = por %p60, %p61
      %p63 = scmp.ne.s32.totalorder %s54, %s55
      %p64 = scmp.eq.s32.totalorder %s23, 0
      %p65 = por %p63, %p64
      %p66 = scmp.ne.s32.totalorder %s54, %s55
      %p67 = scmp.eq.s32.totalorder %s24, 1
      %p68 = por %p66, %p67
      %p70 = scmp.ne.s32.totalorder %s55, %s69
      %p71 = scmp.eq.s32.totalorder %s24, 0
      %p72 = por %p70, %p71
      %s74 = sadd.s32 %s73, 1
      %p77 = scmp.eq.s32.totalorder %s18, 1
      %p78 = scmp.ne.s32.totalorder %s73, %s75
      %p79 = scmp.eq.s32.totalorder %s18, 0
      %p80 = por %p78, %p79
      %p81 = scmp.ne.s32.totalorder %s73, %s75
      %p82 = scmp.eq.s32.totalorder %s23, 1
      %p83 = por %p81, %p82
      %p84 = scmp.ne.s32.totalorder %s75, %s76
      %p85 = scmp.eq.s32.totalorder %s23, 0
      %p86 = por %p84, %p85
      %p87 = scmp.ne.s32.totalorder %s75, %s76
      %p88 = scmp.eq.s32.totalorder %s24, 1
      %p89 = por %p87, %p88
      %p91 = scmp.ne.s32.totalorder %s76, %s90
      %p92 = scmp.eq.s32.totalorder %s24, 0
      %p93 = por %p91, %p92
      %s95 = sadd.s32 %s94, 1
      %p98 = scmp.eq.s32.totalorder %s18, 1
      %p99 = scmp.ne.s32.totalorder %s94, %s96
      %p100 = scmp.eq.s32.totalorder %s18, 0
      %p101 = por %p99, %p100
      %p102 = scmp.ne.s32.totalorder %s94, %s96
      %p103 = scmp.eq.s32.totalorder %s23, 1
      %p104 = por %p102, %p103
      %p105 = scmp.ne.s32.totalorder %s96, %s97
      %p106 = scmp.eq.s32.totalorder %s23, 0
      %p107 = por %p105, %p106
      %p108 = scmp.ne.s32.totalorder %s96, %s97
      %p109 = scmp.eq.s32.totalorder %s24, 1
      %p110 = por %p108, %p109
      %p112 = scmp.ne.s32.totalorder %s97, %s111
      %p113 = scmp.eq.s32.totalorder %s24, 0
      %p114 = por %p112, %p113
      %s116 = sadd.s32 %s115, 1
      %p119 = scmp.eq.s32.totalorder %s18, 1
      %p120 = scmp.ne.s32.totalorder %s115, %s117
      %p121 = scmp.eq.s32.totalorder %s18, 0
      %p122 = por %p120, %p121
      %p123 = scmp.ne.s32.totalorder %s115, %s117
      %p124 = scmp.eq.s32.totalorder %s23, 1
      %p125 = por %p123, %p124
      %p126 = scmp.ne.s32.totalorder %s117, %s118
      %p127 = scmp.eq.s32.totalorder %s23, 0
      %p128 = por %p126, %p127
      %p129 = scmp.ne.s32.totalorder %s117, %s118
      %p130 = scmp.eq.s32.totalorder %s24, 1
      %p131 = por %p129, %p130
      %p133 = scmp.ne.s32.totalorder %s118, %s132
      %p134 = scmp.eq.s32.totalorder %s24, 0
      %p135 = por %p133, %p134
      %s137 = sadd.s32 %s136, 1
      %p140 = scmp.eq.s32.totalorder %s18, 1
      %p141 = scmp.ne.s32.totalorder %s136, %s138
      %p142 = scmp.eq.s32.totalorder %s18, 0
      %p143 = por %p141, %p142
      %p144 = scmp.ne.s32.totalorder %s136, %s138
      %p145 = scmp.eq.s32.totalorder %s23, 1
      %p146 = por %p144, %p145
      %p147 = scmp.ne.s32.totalorder %s138, %s139
      %p148 = scmp.eq.s32.totalorder %s23, 0
      %p149 = por %p147, %p148
      %p150 = scmp.ne.s32.totalorder %s138, %s139
      %p151 = scmp.eq.s32.totalorder %s24, 1
      %p152 = por %p150, %p151
      %p154 = scmp.ne.s32.totalorder %s139, %s153
      %p155 = scmp.eq.s32.totalorder %s24, 0
      %p156 = por %p154, %p155
      %s158 = sadd.s32 %s157, 1
      %p161 = scmp.eq.s32.totalorder %s18, 1
      %p162 = scmp.ne.s32.totalorder %s157, %s159
      %p163 = scmp.eq.s32.totalorder %s18, 0
      %p164 = por %p162, %p163
      %p165 = scmp.ne.s32.totalorder %s157, %s159
      %p166 = scmp.eq.s32.totalorder %s23, 1
      %p167 = por %p165, %p166
      %p168 = scmp.ne.s32.totalorder %s159, %s160
      %p169 = scmp.eq.s32.totalorder %s23, 0
      %p170 = por %p168, %p169
      %p171 = scmp.ne.s32.totalorder %s159, %s160
      %p172 = scmp.eq.s32.totalorder %s24, 1
      %p173 = por %p171, %p172
      %p175 = scmp.ne.s32.totalorder %s160, %s174
      %p176 = scmp.eq.s32.totalorder %s24, 0
      %p177 = por %p175, %p176
      %s178 = ssub.s32 %s18, %s25
      %p179 = scmp.eq.s32.totalorder %s178, 0
      %s181 = sadd.s32 %s180, 1
      %s182 = scalar_select %p179, %s180, %s181
      %p185 = pneg %p179
      %p186 = scmp.eq.s32.totalorder %s18, 1
      %p187 = por %p185, %p186
      %p188 = scmp.ne.s32.totalorder %s180, %s183
      %p189 = scmp.eq.s32.totalorder %s18, 0
      %p190 = por %p188, %p189
      %p191 = scmp.ne.s32.totalorder %s180, %s183
      %p192 = scmp.eq.s32.totalorder %s23, 1
      %p193 = por %p191, %p192
      %p194 = scmp.ne.s32.totalorder %s183, %s184
      %p195 = scmp.eq.s32.totalorder %s23, 0
      %p196 = por %p194, %p195
      %p197 = scmp.ne.s32.totalorder %s183, %s184
      %p198 = scmp.eq.s32.totalorder %s24, 1
      %p199 = por %p197, %p198
      %p201 = scmp.ne.s32.totalorder %s184, %s200
      %p202 = scmp.eq.s32.totalorder %s24, 0
      %p203 = por %p201, %p202
      %p204 = scmp.le.s32.totalorder 1, %s18
      %p205 = scmp.lt.s32.totalorder %s18, 3
      %p206 = pnand %p204, %p205
      %p207 = pneg %p206
      // Predicated region
      $region9: #{tpu_custom_call.1} parent=5 // pred_check
        _
      $region10: #{tpu_custom_call.1} parent=5 // pred_check_branch
        %209 = sbr.rel (%p206) target = $region12
      $region11: #{tpu_custom_call.1} parent=5 // pred_region
        %s210 = ssub.s32 %s18, 1
        // Predicated region
        $region13: #{tpu_custom_call.1} parent=11 // pred_check
          %p211 = pneg %p65
        $region14: #{tpu_custom_call.1} parent=11 // pred_check_branch
          %213 = sbr.rel (%p211) target = $region16
        $region15: #{tpu_custom_call.1} parent=11 // pred_region
          _
        $region16: #{tpu_custom_call.1} parent=11 // pred_fallthru
          _
        // Predicated region
        $region17: #{tpu_custom_call.1} parent=11 // pred_check
          %p214 = pneg %p86
        $region18: #{tpu_custom_call.1} parent=11 // pred_check_branch
          %216 = sbr.rel (%p214) target = $region20
        $region19: #{tpu_custom_call.1} parent=11 // pred_region
          _
        $region20: #{tpu_custom_call.1} parent=11 // pred_fallthru
          _
        // Predicated region
        $region21: #{tpu_custom_call.1} parent=11 // pred_check
          %p217 = pneg %p107
        $region22: #{tpu_custom_call.1} parent=11 // pred_check_branch
          %219 = sbr.rel (%p217) target = $region24
        $region23: #{tpu_custom_call.1} parent=11 // pred_region
          %s221 = ssub.s32 2048, 2048
          %222 = vsyncadd [#allocation3], %s221
          %s223 = sshll.u32 [#allocation2], 4
          %s224 = int_to_ptr.vmem [resolvable:$true] %s223
          %229 = dma.hbm_to_vmem [thread:$0]  %s3, 2048, %s224, [#allocation3], 128, 128, 8
        $region24: #{tpu_custom_call.1} parent=11 // pred_fallthru
          _
        // Predicated region
        $region25: #{tpu_custom_call.1} parent=11 // pred_check
          %p230 = pneg %p128
        $region26: #{tpu_custom_call.1} parent=11 // pred_check_branch
          %232 = sbr.rel (%p230) target = $region28
        $region27: #{tpu_custom_call.1} parent=11 // pred_region
          _
        $region28: #{tpu_custom_call.1} parent=11 // pred_fallthru
          _
        // Predicated region
        $region29: #{tpu_custom_call.1} parent=11 // pred_check
          %p233 = pneg %p149
        $region30: #{tpu_custom_call.1} parent=11 // pred_check_branch
          %235 = sbr.rel (%p233) target = $region32
        $region31: #{tpu_custom_call.1} parent=11 // pred_region
          %s237 = ssub.s32 2048, 2048
          %238 = vsyncadd [#allocation6], %s237
          %s239 = sshll.u32 [#allocation5], 4
          %s240 = int_to_ptr.vmem [resolvable:$true] %s239
          %245 = dma.hbm_to_vmem [thread:$0]  %s5, 2048, %s240, [#allocation6], 128, 128, 8
        $region32: #{tpu_custom_call.1} parent=11 // pred_fallthru
          _
        // Predicated region
        $region33: #{tpu_custom_call.1} parent=11 // pred_check
          %p246 = pneg %p170
        $region34: #{tpu_custom_call.1} parent=11 // pred_check_branch
          %248 = sbr.rel (%p246) target = $region36
        $region35: #{tpu_custom_call.1} parent=11 // pred_region
          _
        $region36: #{tpu_custom_call.1} parent=11 // pred_fallthru
          _
      $region12: #{tpu_custom_call.1} parent=5 // pred_fallthru
        _
      %p249 = scmp.lt.s32.totalorder %s18, 2
      // Predicated region
      $region37: #{tpu_custom_call.1} parent=5 // pred_check
        %p250 = pneg %p249
      $region38: #{tpu_custom_call.1} parent=5 // pred_check_branch
        %252 = sbr.rel (%p250) target = $region40
      $region39: #{tpu_custom_call.1} parent=5 // pred_region
        // Predicated region
        $region41: #{tpu_custom_call.1} parent=39 // pred_check
          %p253 = pneg %p38
        $region42: #{tpu_custom_call.1} parent=39 // pred_check_branch
          %255 = sbr.rel (%p253) target = $region44
        $region43: #{tpu_custom_call.1} parent=39 // pred_region
          %s256 = smul.u32 4, %s18
          %p257 = scmp.lt.s32.totalorder %s256, 7
          %s258 = scalar_select %p257, %s256, 7
          %s259 = smul.addr %s258, 8
          %s260 = scalar_lea.vmem %s0, %s259
          %s261 = smul.u32 4, %s18
        $region44: #{tpu_custom_call.1} parent=39 // pred_fallthru
          _
      $region40: #{tpu_custom_call.1} parent=5 // pred_fallthru
        _
      %p262 = scmp.le.s32.totalorder 1, %s18
      %p263 = scmp.lt.s32.totalorder %s18, 3
      %p264 = pnand %p262, %p263
      %p265 = pneg %p264
      // Predicated region
      $region45: #{tpu_custom_call.1} parent=5 // pred_check
        _
      $region46: #{tpu_custom_call.1} parent=5 // pred_check_branch
        %267 = sbr.rel (%p264) target = $region48
      $region47: #{tpu_custom_call.1} parent=5 // pred_region
        %s268 = ssub.s32 %s18, 1
        // Predicated region
        $region49: #{tpu_custom_call.1} parent=47 // pred_check
          %p269 = pneg %p107
        $region50: #{tpu_custom_call.1} parent=47 // pred_check_branch
          %271 = sbr.rel (%p269) target = $region52
        $region51: #{tpu_custom_call.1} parent=47 // pred_region
          %272 = dma.done [#allocation3], 2048
        $region52: #{tpu_custom_call.1} parent=47 // pred_fallthru
          _
        // Predicated region
        $region53: #{tpu_custom_call.1} parent=47 // pred_check
          %p273 = pneg %p149
        $region54: #{tpu_custom_call.1} parent=47 // pred_check_branch
          %275 = sbr.rel (%p273) target = $region56
        $region55: #{tpu_custom_call.1} parent=47 // pred_region
          %276 = dma.done [#allocation6], 2048
        $region56: #{tpu_custom_call.1} parent=47 // pred_fallthru
          _
        %s277 = smul.u32 4, %s23
        %p278 = scmp.lt.s32.totalorder %s277, 7
        %s279 = scalar_select %p278, %s277, 7
        %s280 = smul.addr %s279, 8
        %s281 = scalar_lea.vmem %s0, %s280
        %p282 = pneg %p44
        %p283 = pneg %p41
        %p284 = pneg %p65
        %p285 = pneg %p62
        %p286 = pneg %p86
        %p287 = pneg %p83
        %p288 = pneg %p107
        %p289 = pneg %p104
        %p290 = pneg %p128
        %p291 = pneg %p125
        %p292 = pneg %p149
        %p293 = pneg %p146
        %p294 = pneg %p170
        %p295 = pneg %p167
        %p296 = pneg %p196
        %p297 = pneg %p193
        %s298 = sand.u32 %s183, 1
        %s299 = scalar_lea.sflag [#allocation4], %s298
        %s300 = sand.u32 %s183, 1
        %s301 = smul.addr %s300, 32
        %s302 = scalar_lea.vmem [#allocation7], %s301
        %s303 = smul.u32 4, %s23
        %p304 = scmp.lt.s32.totalorder %s303, 7
        %s305 = scalar_select %p304, %s303, 7
        %s306 = smul.addr %s305, 8
        %s307 = scalar_lea.vmem %s0, %s306
        %s308 = smul.u32 4, %s23
        %s309 = smul.u32 4, %s23
        %v310 = vld [vmem:[%s307] sm:$0xff]
        %v311 = vld [vmem:[%s307 + $0x8] sm:$0xff]
        %v312 = vld [vmem:[%s307 + $0x10] sm:$0xff]
        %v313 = vld [vmem:[%s307 + $0x18] sm:$0xff]
        %v314 = vld [vmem:[%s1] sm:$0xff]
        %v315 = vld [vmem:[%s1 + $0x8] sm:$0xff]
        %v316 = vld [vmem:[%s2] sm:$0x1]
        %v318 = vlaneseq
        %v319 = vshrl.u32 %v318, 7
        %v320 = vsub.s32 0, %v319
        %v321 = vrot.slane %v316, %v320
        %vm323 = vcmask 130048
        %v325 = vsel %vm323, %v310, 0
        %v328 = vsel %vm323, %v311, 0
        %v331 = vsel %vm323, %v312, 0
        %v334 = vsel %vm323, %v313, 0
        %336 = vmatprep.subr.mxu0 0.0
        %337 = vmatpush1.msra.mxu0 0.0
        %338 = vmatprep.subr.mxu0 0.0
        %339 = vmatpush1.msra.mxu0 0.0
        %340 = vmatprep.subr.mxu0 0.0
        %341 = vmatpush1.msra.mxu0 0.0
        %342 = vmatprep.subr.mxu0 0.0
        %343 = vmatpush1.msra.mxu0 0.0
        %344 = vmatprep.subr.mxu0 0.0
        %345 = vmatpush1.msra.mxu0 0.0
        %346 = vmatprep.subr.mxu0 0.0
        %347 = vmatpush1.msra.mxu0 0.0
        %348 = vmatprep.subr.mxu0 0.0
        %349 = vmatpush1.msra.mxu0 0.0
        %350 = vmatprep.subr.mxu0 0.0
        %351 = vmatpush1.msra.mxu0 0.0
        %352 = vmatprep.subr.mxu0 0.0
        %353 = vmatpush1.msra.mxu0 0.0
        %354 = vmatprep.subr.mxu0 0.0
        %355 = vmatpush1.msra.mxu0 0.0
        %356 = vmatprep.subr.mxu0 0.0
        %357 = vmatpush1.msra.mxu0 0.0
        %358 = vmatprep.subr.mxu0 0.0
        %359 = vmatpush1.msra.mxu0 0.0
        %360 = vmatprep.subr.mxu0 0.0
        %361 = vmatpush1.msra.mxu0 0.0
        %362 = vmatprep.subr.mxu0 0.0
        %363 = vmatpush1.msra.mxu0 0.0
        %364 = vmatprep.subr.mxu0 0.0
        %365 = vmatpush1.msra.mxu0 %v315
        %366 = vmatprep.subr.mxu0 0.0
        %367 = vmatpush1.msra.mxu0 %v314
        %368 = vmatprep.subr.mxu0 0.0
        %369 = vmatpush2.msra.mxu0 0.0
        %370 = vmatprep.subr.mxu0 0.0
        %371 = vmatpush2.msra.mxu0 0.0
        %372 = vmatprep.subr.mxu0 0.0
        %373 = vmatpush2.msra.mxu0 0.0
        %374 = vmatprep.subr.mxu0 0.0
        %375 = vmatpush2.msra.mxu0 0.0
        %376 = vmatprep.subr.mxu0 0.0
        %377 = vmatpush2.msra.mxu0 0.0
        %378 = vmatprep.subr.mxu0 0.0
        %379 = vmatpush2.msra.mxu0 0.0
        %380 = vmatprep.subr.mxu0 0.0
        %381 = vmatpush2.msra.mxu0 0.0
        %382 = vmatprep.subr.mxu0 0.0
        %383 = vmatpush2.msra.mxu0 0.0
        %384 = vmatprep.subr.mxu0 0.0
        %385 = vmatpush2.msra.mxu0 0.0
        %386 = vmatprep.subr.mxu0 0.0
        %387 = vmatpush2.msra.mxu0 0.0
        %388 = vmatprep.subr.mxu0 0.0
        %389 = vmatpush2.msra.mxu0 0.0
        %390 = vmatprep.subr.mxu0 0.0
        %391 = vmatpush2.msra.mxu0 0.0
        %392 = vmatprep.subr.mxu0 0.0
        %393 = vmatpush2.msra.mxu0 0.0
        %394 = vmatprep.subr.mxu0 0.0
        %395 = vmatpush2.msra.mxu0 0.0
        %396 = vmatprep.subr.mxu0 0.0
        %397 = vmatpush2.msra.mxu0 0.0
        %398 = vmatprep.subr.mxu0 0.0
        %399 = vmatpush2.msra.mxu0 0.0
        %400 = vmatprep.mubr.f32.mxu0 0.0
        %401 = vmatmul.mubr.f32.gmra.mxu0 %v325
        %v402 = vpop.f32.mrf.mxu0
        %v403 = vadd.f32 %v321, %v402
        %v404 = vpop.f32.mrf.mxu0
        %405 = vmatprep.mubr.f32.mxu0 0.0
        %406 = vmatmul.mubr.f32.gmra.mxu0 %v328
        %v407 = vpop.f32.mrf.mxu0
        %v408 = vadd.f32 %v321, %v407
        %v409 = vpop.f32.mrf.mxu0
        %410 = vmatprep.mubr.f32.mxu0 0.0
        %411 = vmatmul.mubr.f32.gmra.mxu0 %v331
        %v412 = vpop.f32.mrf.mxu0
        %v413 = vadd.f32 %v321, %v412
        %v414 = vpop.f32.mrf.mxu0
        %415 = vmatprep.mubr.f32.mxu0 0.0
        %416 = vmatmul.mubr.f32.gmra.mxu0 %v334
        %v417 = vpop.f32.mrf.mxu0
        %v418 = vadd.f32 %v321, %v417
        %v419 = vpop.f32.mrf.mxu0
        %420 = vdwg.mxu0
        %v421 = vxor.u32 %v403, 2147483648
        %v422 = vxor.u32 %v408, 2147483648
        %v423 = vxor.u32 %v413, 2147483648
        %v424 = vxor.u32 %v418, 2147483648
        %v425 = vmul.f32 %v421, 1.442695
        %v426 = vpow.pop %v425
        %v427 = vmul.f32 %v422, 1.442695
        %v428 = vpow.pop %v427
        %v429 = vmul.f32 %v423, 1.442695
        %v430 = vpow.pop %v429
        %v431 = vmul.f32 %v424, 1.442695
        %v432 = vpow.pop %v431
        %v433 = vadd.f32 %v426, 1.0
        %v434 = vadd.f32 %v428, 1.0
        %v435 = vadd.f32 %v430, 1.0
        %v436 = vadd.f32 %v432, 1.0
        %v437 = vrcp.pop %v433
        %v438 = vmul.f32 1.0, %v437
        %v439 = vrcp.pop %v434
        %v440 = vmul.f32 1.0, %v439
        %v441 = vrcp.pop %v435
        %v442 = vmul.f32 1.0, %v441
        %v443 = vrcp.pop %v436
        %v444 = vmul.f32 1.0, %v443
        %v445 = vld [vmem:[#allocation2] sm:$0xff]
        %v446 = vld [vmem:[#allocation2 + $0x8] sm:$0xff]
        %v447 = vld [vmem:[#allocation2 + $0x10] sm:$0xff]
        %v448 = vld [vmem:[#allocation2 + $0x18] sm:$0xff]
        %v449 = vld [vmem:[#allocation2 + $0x20] sm:$0xff]
        %v450 = vld [vmem:[#allocation2 + $0x28] sm:$0xff]
        %v451 = vld [vmem:[#allocation2 + $0x30] sm:$0xff]
        %v452 = vld [vmem:[#allocation2 + $0x38] sm:$0xff]
        %v453 = vld [vmem:[#allocation2 + $0x40] sm:$0xff]
        %v454 = vld [vmem:[#allocation2 + $0x48] sm:$0xff]
        %v455 = vld [vmem:[#allocation2 + $0x50] sm:$0xff]
        %v456 = vld [vmem:[#allocation2 + $0x58] sm:$0xff]
        %v457 = vld [vmem:[#allocation2 + $0x60] sm:$0xff]
        %v458 = vld [vmem:[#allocation2 + $0x68] sm:$0xff]
        %v459 = vld [vmem:[#allocation2 + $0x70] sm:$0xff]
        %v460 = vld [vmem:[#allocation2 + $0x78] sm:$0xff]
        %v461 = vld [vmem:[%s4] sm:$0x1]
        %v463 = vlaneseq
        %v464 = vshrl.u32 %v463, 7
        %v465 = vsub.s32 0, %v464
        %v466 = vrot.slane %v461, %v465
        %468 = vmatprep.subr.mxu0 0.0
        %469 = vmatpush1.msra.mxu0 %v460
        %470 = vmatprep.subr.mxu0 0.0
        %471 = vmatpush1.msra.mxu0 %v459
        %472 = vmatprep.subr.mxu0 0.0
        %473 = vmatpush1.msra.mxu0 %v458
        %474 = vmatprep.subr.mxu0 0.0
        %475 = vmatpush1.msra.mxu0 %v457
        %476 = vmatprep.subr.mxu0 0.0
        %477 = vmatpush1.msra.mxu0 %v456
        %478 = vmatprep.subr.mxu0 0.0
        %479 = vmatpush1.msra.mxu0 %v455
        %480 = vmatprep.subr.mxu0 0.0
        %481 = vmatpush1.msra.mxu0 %v454
        %482 = vmatprep.subr.mxu0 0.0
        %483 = vmatpush1.msra.mxu0 %v453
        %484 = vmatprep.subr.mxu0 0.0
        %485 = vmatpush1.msra.mxu0 %v452
        %486 = vmatprep.subr.mxu0 0.0
        %487 = vmatpush1.msra.mxu0 %v451
        %488 = vmatprep.subr.mxu0 0.0
        %489 = vmatpush1.msra.mxu0 %v450
        %490 = vmatprep.subr.mxu0 0.0
        %491 = vmatpush1.msra.mxu0 %v449
        %492 = vmatprep.subr.mxu0 0.0
        %493 = vmatpush1.msra.mxu0 %v448
        %494 = vmatprep.subr.mxu0 0.0
        %495 = vmatpush1.msra.mxu0 %v447
        %496 = vmatprep.subr.mxu0 0.0
        %497 = vmatpush1.msra.mxu0 %v446
        %498 = vmatprep.subr.mxu0 0.0
        %499 = vmatpush1.msra.mxu0 %v445
        %500 = vmatprep.subr.mxu0 0.0
        %501 = vmatpush2.msra.mxu0 0.0
        %502 = vmatprep.subr.mxu0 0.0
        %503 = vmatpush2.msra.mxu0 0.0
        %504 = vmatprep.subr.mxu0 0.0
        %505 = vmatpush2.msra.mxu0 0.0
        %506 = vmatprep.subr.mxu0 0.0
        %507 = vmatpush2.msra.mxu0 0.0
        %508 = vmatprep.subr.mxu0 0.0
        %509 = vmatpush2.msra.mxu0 0.0
        %510 = vmatprep.subr.mxu0 0.0
        %511 = vmatpush2.msra.mxu0 0.0
        %512 = vmatprep.subr.mxu0 0.0
        %513 = vmatpush2.msra.mxu0 0.0
        %514 = vmatprep.subr.mxu0 0.0
        %515 = vmatpush2.msra.mxu0 0.0
        %516 = vmatprep.subr.mxu0 0.0
        %517 = vmatpush2.msra.mxu0 0.0
        %518 = vmatprep.subr.mxu0 0.0
        %519 = vmatpush2.msra.mxu0 0.0
        %520 = vmatprep.subr.mxu0 0.0
        %521 = vmatpush2.msra.mxu0 0.0
        %522 = vmatprep.subr.mxu0 0.0
        %523 = vmatpush2.msra.mxu0 0.0
        %524 = vmatprep.subr.mxu0 0.0
        %525 = vmatpush2.msra.mxu0 0.0
        %526 = vmatprep.subr.mxu0 0.0
        %527 = vmatpush2.msra.mxu0 0.0
        %528 = vmatprep.subr.mxu0 0.0
        %529 = vmatpush2.msra.mxu0 0.0
        %530 = vmatprep.subr.mxu0 0.0
        %531 = vmatpush2.msra.mxu0 0.0
        %532 = vmatprep.mubr.f32.mxu0 0.0
        %533 = vmatmul.mubr.f32.gmra.mxu0 %v438
        %v534 = vpop.f32.mrf.mxu0
        %v535 = vadd.f32 %v466, %v534
        %v536 = vpop.f32.mrf.mxu0
        %537 = vmatprep.mubr.f32.mxu0 0.0
        %538 = vmatmul.mubr.f32.gmra.mxu0 %v440
        %v539 = vpop.f32.mrf.mxu0
        %v540 = vadd.f32 %v466, %v539
        %v541 = vpop.f32.mrf.mxu0
        %542 = vmatprep.mubr.f32.mxu0 0.0
        %543 = vmatmul.mubr.f32.gmra.mxu0 %v442
        %v544 = vpop.f32.mrf.mxu0
        %v545 = vadd.f32 %v466, %v544
        %v546 = vpop.f32.mrf.mxu0
        %547 = vmatprep.mubr.f32.mxu0 0.0
        %548 = vmatmul.mubr.f32.gmra.mxu0 %v444
        %v549 = vpop.f32.mrf.mxu0
        %v550 = vadd.f32 %v466, %v549
        %v551 = vpop.f32.mrf.mxu0
        %552 = vdwg.mxu0
        %v553 = vxor.u32 %v535, 2147483648
        %v554 = vxor.u32 %v540, 2147483648
        %v555 = vxor.u32 %v545, 2147483648
        %v556 = vxor.u32 %v550, 2147483648
        %v557 = vmul.f32 %v553, 1.442695
        %v558 = vpow.pop %v557
        %v559 = vmul.f32 %v554, 1.442695
        %v560 = vpow.pop %v559
        %v561 = vmul.f32 %v555, 1.442695
        %v562 = vpow.pop %v561
        %v563 = vmul.f32 %v556, 1.442695
        %v564 = vpow.pop %v563
        %v565 = vadd.f32 %v558, 1.0
        %v566 = vadd.f32 %v560, 1.0
        %v567 = vadd.f32 %v562, 1.0
        %v568 = vadd.f32 %v564, 1.0
        %v569 = vrcp.pop %v565
        %v570 = vmul.f32 1.0, %v569
        %v571 = vrcp.pop %v566
        %v572 = vmul.f32 1.0, %v571
        %v573 = vrcp.pop %v567
        %v574 = vmul.f32 1.0, %v573
        %v575 = vrcp.pop %v568
        %v576 = vmul.f32 1.0, %v575
        %v577 = vld [vmem:[#allocation5] sm:$0xff]
        %v578 = vld [vmem:[#allocation5 + $0x8] sm:$0xff]
        %v579 = vld [vmem:[#allocation5 + $0x10] sm:$0xff]
        %v580 = vld [vmem:[#allocation5 + $0x18] sm:$0xff]
        %v581 = vld [vmem:[#allocation5 + $0x20] sm:$0xff]
        %v582 = vld [vmem:[#allocation5 + $0x28] sm:$0xff]
        %v583 = vld [vmem:[#allocation5 + $0x30] sm:$0xff]
        %v584 = vld [vmem:[#allocation5 + $0x38] sm:$0xff]
        %v585 = vld [vmem:[#allocation5 + $0x40] sm:$0xff]
        %v586 = vld [vmem:[#allocation5 + $0x48] sm:$0xff]
        %v587 = vld [vmem:[#allocation5 + $0x50] sm:$0xff]
        %v588 = vld [vmem:[#allocation5 + $0x58] sm:$0xff]
        %v589 = vld [vmem:[#allocation5 + $0x60] sm:$0xff]
        %v590 = vld [vmem:[#allocation5 + $0x68] sm:$0xff]
        %v591 = vld [vmem:[#allocation5 + $0x70] sm:$0xff]
        %v592 = vld [vmem:[#allocation5 + $0x78] sm:$0xff]
        %v593 = vld [vmem:[%s6] sm:$0x1]
        %v595 = vlaneseq
        %v596 = vshrl.u32 %v595, 7
        %v597 = vsub.s32 0, %v596
        %v598 = vrot.slane %v593, %v597
        %600 = vmatprep.subr.mxu0 0.0
        %601 = vmatpush1.msra.mxu0 %v592
        %602 = vmatprep.subr.mxu0 0.0
        %603 = vmatpush1.msra.mxu0 %v591
        %604 = vmatprep.subr.mxu0 0.0
        %605 = vmatpush1.msra.mxu0 %v590
        %606 = vmatprep.subr.mxu0 0.0
        %607 = vmatpush1.msra.mxu0 %v589
        %608 = vmatprep.subr.mxu0 0.0
        %609 = vmatpush1.msra.mxu0 %v588
        %610 = vmatprep.subr.mxu0 0.0
        %611 = vmatpush1.msra.mxu0 %v587
        %612 = vmatprep.subr.mxu0 0.0
        %613 = vmatpush1.msra.mxu0 %v586
        %614 = vmatprep.subr.mxu0 0.0
        %615 = vmatpush1.msra.mxu0 %v585
        %616 = vmatprep.subr.mxu0 0.0
        %617 = vmatpush1.msra.mxu0 %v584
        %618 = vmatprep.subr.mxu0 0.0
        %619 = vmatpush1.msra.mxu0 %v583
        %620 = vmatprep.subr.mxu0 0.0
        %621 = vmatpush1.msra.mxu0 %v582
        %622 = vmatprep.subr.mxu0 0.0
        %623 = vmatpush1.msra.mxu0 %v581
        %624 = vmatprep.subr.mxu0 0.0
        %625 = vmatpush1.msra.mxu0 %v580
        %626 = vmatprep.subr.mxu0 0.0
        %627 = vmatpush1.msra.mxu0 %v579
        %628 = vmatprep.subr.mxu0 0.0
        %629 = vmatpush1.msra.mxu0 %v578
        %630 = vmatprep.subr.mxu0 0.0
        %631 = vmatpush1.msra.mxu0 %v577
        %632 = vmatprep.subr.mxu0 0.0
        %633 = vmatpush2.msra.mxu0 0.0
        %634 = vmatprep.subr.mxu0 0.0
        %635 = vmatpush2.msra.mxu0 0.0
        %636 = vmatprep.subr.mxu0 0.0
        %637 = vmatpush2.msra.mxu0 0.0
        %638 = vmatprep.subr.mxu0 0.0
        %639 = vmatpush2.msra.mxu0 0.0
        %640 = vmatprep.subr.mxu0 0.0
        %641 = vmatpush2.msra.mxu0 0.0
        %642 = vmatprep.subr.mxu0 0.0
        %643 = vmatpush2.msra.mxu0 0.0
        %644 = vmatprep.subr.mxu0 0.0
        %645 = vmatpush2.msra.mxu0 0.0
        %646 = vmatprep.subr.mxu0 0.0
        %647 = vmatpush2.msra.mxu0 0.0
        %648 = vmatprep.subr.mxu0 0.0
        %649 = vmatpush2.msra.mxu0 0.0
        %650 = vmatprep.subr.mxu0 0.0
        %651 = vmatpush2.msra.mxu0 0.0
        %652 = vmatprep.subr.mxu0 0.0
        %653 = vmatpush2.msra.mxu0 0.0
        %654 = vmatprep.subr.mxu0 0.0
        %655 = vmatpush2.msra.mxu0 0.0
        %656 = vmatprep.subr.mxu0 0.0
        %657 = vmatpush2.msra.mxu0 0.0
        %658 = vmatprep.subr.mxu0 0.0
        %659 = vmatpush2.msra.mxu0 0.0
        %660 = vmatprep.subr.mxu0 0.0
        %661 = vmatpush2.msra.mxu0 0.0
        %662 = vmatprep.subr.mxu0 0.0
        %663 = vmatpush2.msra.mxu0 0.0
        %664 = vmatprep.mubr.f32.mxu0 0.0
        %665 = vmatmul.mubr.f32.gmra.mxu0 %v570
        %v666 = vpop.f32.mrf.mxu0
        %v667 = vadd.f32 %v598, %v666
        %v668 = vpop.f32.mrf.mxu0
        %669 = vmatprep.mubr.f32.mxu0 0.0
        %670 = vmatmul.mubr.f32.gmra.mxu0 %v572
        %v671 = vpop.f32.mrf.mxu0
        %v672 = vadd.f32 %v598, %v671
        %v673 = vpop.f32.mrf.mxu0
        %674 = vmatprep.mubr.f32.mxu0 0.0
        %675 = vmatmul.mubr.f32.gmra.mxu0 %v574
        %v676 = vpop.f32.mrf.mxu0
        %v677 = vadd.f32 %v598, %v676
        %v678 = vpop.f32.mrf.mxu0
        %679 = vmatprep.mubr.f32.mxu0 0.0
        %680 = vmatmul.mubr.f32.gmra.mxu0 %v576
        %v681 = vpop.f32.mrf.mxu0
        %v682 = vadd.f32 %v598, %v681
        %v683 = vpop.f32.mrf.mxu0
        %684 = vdwg.mxu0
        %685 = vmax.xlane.f32.xlu0 %v667
        %v686 = vpop.xlane.xlu0 %685
        %687 = vmax.xlane.f32.xlu0 %v672
        %v688 = vpop.xlane.xlu0 %687
        %689 = vmax.xlane.f32.xlu0 %v677
        %v690 = vpop.xlane.xlu0 %689
        %691 = vmax.xlane.f32.xlu0 %v682
        %v692 = vpop.xlane.xlu0 %691
        %v693 = vsub.f32 %v667, %v686
        %v694 = vsub.f32 %v672, %v688
        %v695 = vsub.f32 %v677, %v690
        %v696 = vsub.f32 %v682, %v692
        %v697 = vmul.f32 %v693, 1.442695
        %v698 = vpow.pop %v697
        %v699 = vmul.f32 %v694, 1.442695
        %v700 = vpow.pop %v699
        %v701 = vmul.f32 %v695, 1.442695
        %v702 = vpow.pop %v701
        %v703 = vmul.f32 %v696, 1.442695
        %v704 = vpow.pop %v703
        %705 = vadd.xlane.f32.xlu0 %v698
        %v706 = vpop.xlane.xlu0 %705
        %707 = vadd.xlane.f32.xlu0 %v700
        %v708 = vpop.xlane.xlu0 %707
        %709 = vadd.xlane.f32.xlu0 %v702
        %v710 = vpop.xlane.xlu0 %709
        %711 = vadd.xlane.f32.xlu0 %v704
        %v712 = vpop.xlane.xlu0 %711
        %v713 = vlog2.pop %v706
        %v714 = vmul.f32 %v713, 0.6931472
        %v715 = vlog2.pop %v708
        %v716 = vmul.f32 %v715, 0.6931472
        %v717 = vlog2.pop %v710
        %v718 = vmul.f32 %v717, 0.6931472
        %v719 = vlog2.pop %v712
        %v720 = vmul.f32 %v719, 0.6931472
        %v721 = vsub.f32 %v693, %v714
        %v722 = vsub.f32 %v694, %v716
        %v723 = vsub.f32 %v695, %v718
        %v724 = vsub.f32 %v696, %v720
        %725 = vst [vmem:[%s302] sm:$0xff] %v721
        %726 = vst [vmem:[%s302 + $0x8] sm:$0xff] %v722
        %727 = vst [vmem:[%s302 + $0x10] sm:$0xff] %v723
        %728 = vst [vmem:[%s302 + $0x18] sm:$0xff] %v724
        %s729 = sand.u32 %s183, 1
        %s730 = scalar_lea.sflag [#allocation4], %s729
        %s731 = sand.u32 %s183, 1
        %s732 = smul.addr %s731, 32
        %s733 = scalar_lea.vmem [#allocation7], %s732
        // Predicated region
        $region57: #{tpu_custom_call.1} parent=47 // pred_check
          %p734 = pneg %p193
        $region58: #{tpu_custom_call.1} parent=47 // pred_check_branch
          %736 = sbr.rel (%p734) target = $region60
        $region59: #{tpu_custom_call.1} parent=47 // pred_region
          %s737 = smul.u32 4, %s23
          %s739 = ssub.s32 512, 512
          %740 = vsyncadd %s730, %s739
          %s741 = smul.addr %s737, 128
          %s742 = scalar_lea.hbm %s7, %s741
          %s743 = sshll.u32 %s733, 4
          %s744 = int_to_ptr.vmem [resolvable:$true] %s743
          %749 = dma.vmem_to_hbm [thread:$0]  %s744, 512, %s742, %s730, 128, 128, 8
        $region60: #{tpu_custom_call.1} parent=47 // pred_fallthru
          _
      $region48: #{tpu_custom_call.1} parent=5 // pred_fallthru
        _
      %p750 = scmp.le.s32.totalorder 2, %s18
      // Predicated region
      $region61: #{tpu_custom_call.1} parent=5 // pred_check
        %p751 = pneg %p750
      $region62: #{tpu_custom_call.1} parent=5 // pred_check_branch
        %753 = sbr.rel (%p751) target = $region64
      $region63: #{tpu_custom_call.1} parent=5 // pred_region
        %s754 = ssub.s32 %s18, 2
        // Predicated region
        $region65: #{tpu_custom_call.1} parent=63 // pred_check
          %p755 = pneg %p199
        $region66: #{tpu_custom_call.1} parent=63 // pred_check_branch
          %757 = sbr.rel (%p755) target = $region68
        $region67: #{tpu_custom_call.1} parent=63 // pred_region
          %s758 = sand.u32 %s184, 1
          %s759 = scalar_lea.sflag [#allocation4], %s758
          %s760 = sand.u32 %s184, 1
          %s761 = smul.addr %s760, 32
          %s762 = scalar_lea.vmem [#allocation7], %s761
          %763 = dma.done %s759, 512
        $region68: #{tpu_custom_call.1} parent=63 // pred_fallthru
          _
      $region64: #{tpu_custom_call.1} parent=5 // pred_fallthru
        _
    $region6: #{tpu_custom_call.1} parent=1 // loop_footer
      %s22 = sadd.s32 1, %s18
    $region7: #{tpu_custom_call.1} parent=1 // loop_footer_branch
      %17 = sbr.rel target = $region3
    $region8: #{tpu_custom_call.1} parent=1 // loop_exit
      _
    %764 = vsyncpa [#allocation3], 1
    %s765 = scalar_lea.sflag [#allocation3], 1
    %766 = vsyncpa %s765, 1
    %767 = vsyncpa [#allocation6], 1
    %768 = vsyncpa [#allocation4], 1
    %s769 = scalar_lea.sflag [#allocation4], 1
    %770 = vsyncpa %s769, 1

</llo_original>
